<compile_context>
chip_gen: v7x
topology: tpu7x:2x2x1
jax: 0.10.0
libtpu: 0.0.40
codegen_flags: <defaults>
</compile_context>

<pallas_src>
import functools

import numpy as np
import jax
import jax.numpy as jnp
from jax.experimental import pallas as pl
from jax.experimental.pallas import tpu as pltpu


# ----------------------------- Pallas kernel ---------------------------------
def _make_kernel(BC, HW, min_snr_loss_weight, min_snr_gamma):
    inv_total = 1.0 / float(BC * HW)   # == 1 / (B * C * H * W)

    def kernel(scal_ref, img_ref, eps_ref, wbd_ref, loss_ref):
        i = pl.program_id(0)

        # merged per-row scalars: column 0 = continuous time t, column 1 = denoiser bias
        t_col = scal_ref[:, 0:1]                              # (BC, 1)
        bias_col = scal_ref[:, 1:2]                           # (BC, 1)

        # beta_linear_log_snr schedule, algebraically simplified:
        #   em1   = expm1(1e-4 + 10 t^2)
        #   alpha = sqrt(sigmoid(log_snr))  = rsqrt(1 + em1)
        #   sigma = sqrt(sigmoid(-log_snr)) = sqrt(em1) * alpha
        #   snr   = exp(log_snr)            = 1 / em1
        # expm1 computed cancellation-free: 4-term series for small x, exp(x)-1 otherwise.
        x = 1e-4 + 10.0 * t_col * t_col
        em1_series = x * (1.0 + x * (0.5 + x * ((1.0 / 6.0) + x * (1.0 / 24.0))))
        em1 = jnp.where(x < 0.1, em1_series, jnp.exp(x) - 1.0)
        alpha = jax.lax.rsqrt(1.0 + em1)                      # (BC, 1)
        sigma = jnp.sqrt(em1) * alpha                         # (BC, 1)

        # normalize_to_neg_one_to_one + q_sample
        x0 = img_ref[...] * 2.0 - 1.0                         # (BC, lane_tile)
        eps = eps_ref[...]
        x_t = alpha * x0 + sigma * eps

        # TODO(synk): the real denoiser is an external Unet constructor argument; replaced
        # by a deterministic pointwise channel-mixing conv that ignores the log-SNR
        # conditioning.  Batch is folded into the sublane axis via a block-diagonal weight,
        # so the whole batch's channel mix is ONE MXU matmul.
        mix = jnp.dot(wbd_ref[...], x_t, preferred_element_type=jnp.float32)
        model_out = mix + bias_col                            # (BC, lane_tile)

        # objective: pred_noise MSE
        se = (model_out - eps) ** 2

        if min_snr_loss_weight:
            # Module source: loss_weight = snr.clamp(min=gamma) / snr.  With snr = 1/em1
            # this is exactly max(1, gamma * em1) (no divide / reciprocal needed).
            # NOTE: the Min-SNR-gamma paper uses clamp(max=gamma); we follow the provided
            # PyTorch module verbatim.
            se = se * jnp.maximum(1.0, min_snr_gamma * em1)

        # mean over (c,h,w) per batch then mean over batch == globally scaled sum,
        # accumulated across H*W tiles into the SMEM scalar output.
        block_sum = jnp.sum(se) * inv_total

        @pl.when(i == 0)
        def _():
            loss_ref[0, 0] = 0.0

        loss_ref[0, 0] += block_sum

    return kernel


def _pick_lane_tile(HW, max_lanes=2048):
    """Largest lane-dense tile: whole HW if small, else a multiple-of-128 divisor."""
    if HW <= max_lanes:
        return HW
    for t in range(max_lanes, 0, -128):
        if HW % t == 0:
            return t
    return HW


# ----------------------------- wrappers ----------------------------------------
def prepare_denoiser_params(w, bias, batch):
    """Parameter-only prep, hoisted out of the per-step path (review item)."""
    C = w.shape[0]
    # block-diagonal (per-batch) copy of the pointwise-conv weight so one (BC, BC)
    # channel mix covers every batch element at once.
    wbd = jnp.kron(jnp.eye(batch, dtype=jnp.float32), w.astype(jnp.float32))   # (BC, BC)
    bias_rows = jnp.tile(bias.astype(jnp.float32), batch).reshape(batch * C, 1)
    return wbd, bias_rows


@functools.partial(jax.jit, static_argnames=("min_snr_loss_weight", "min_snr_gamma"))
def continuous_time_gaussian_diffusion_loss(img, times, noise, wbd, bias_rows, *,
                                            min_snr_loss_weight=False,
                                            min_snr_gamma=5.0):
    """Pallas implementation of ContinuousTimeGaussianDiffusion.forward (training loss)."""
    B, C, H, W = img.shape
    BC, HW = B * C, H * W

    img2 = img.reshape(BC, HW).astype(jnp.float32)            # (B*C, H*W), lane-dense
    eps2 = noise.reshape(BC, HW).astype(jnp.float32)

    # merged per-row scalar table: one tiny DMA instead of two (review item)
    t_rows = jnp.repeat(times.astype(jnp.float32), C).reshape(BC, 1)
    scal = jnp.concatenate([t_rows, bias_rows], axis=1)       # (BC, 2)

    lane_tile = _pick_lane_tile(HW)
    n_blk = HW // lane_tile

    kernel = _make_kernel(BC, HW, bool(min_snr_loss_weight), float(min_snr_gamma))

    loss = pl.pallas_call(
        kernel,
        out_shape=jax.ShapeDtypeStruct((1, 1), jnp.float32),
        grid_spec=pltpu.PrefetchScalarGridSpec(
            num_scalar_prefetch=0,
            grid=(n_blk,),                                     # tiles H*W; 1 step at test size
            in_specs=[
                pl.BlockSpec((BC, 2), lambda i: (0, 0)),       # [t, bias] per row
                pl.BlockSpec((BC, lane_tile), lambda i: (0, i)),   # img  (B*C, tile)
                pl.BlockSpec((BC, lane_tile), lambda i: (0, i)),   # noise
                pl.BlockSpec((BC, BC), lambda i: (0, 0)),      # block-diag weight
            ],
            # scalar loss lives in SMEM: no padded (8,128) VMEM output tile (review item)
            out_specs=pl.BlockSpec(memory_space=pltpu.MemorySpace.SMEM),
        ),
        compiler_params=pltpu.CompilerParams(
            # reduction axis (shared SMEM accumulator) -> "arbitrary"
            dimension_semantics=("arbitrary",),
            vmem_limit_bytes=48 * 1024 * 1024,                 # headroom for v7x (64 MiB VMEM)
        ),
    )(scal, img2, eps2, wbd)

    return loss[0, 0]


# ----------------------------- pure-JAX reference ------------------------------
def reference_loss(img, times, noise, w, bias, min_snr_loss_weight=False, min_snr_gamma=5.0):
    t = times.astype(jnp.float32)
    log_snr = -jnp.log(jnp.maximum(jnp.expm1(1e-4 + 10.0 * t * t), 1e-20))   # (B,)
    pad = log_snr[:, None, None, None]
    alpha = jnp.sqrt(jax.nn.sigmoid(pad))
    sigma = jnp.sqrt(jax.nn.sigmoid(-pad))
    x0 = img * 2.0 - 1.0
    x_t = alpha * x0 + sigma * noise
    model_out = jnp.einsum('oc,bchw->bohw', w, x_t,
                           precision=jax.lax.Precision.HIGHEST) + bias[None, :, None, None]
    losses = jnp.mean((model_out - noise) ** 2, axis=(1, 2, 3))
    if min_snr_loss_weight:
        snr = jnp.exp(log_snr)
        losses = losses * (jnp.maximum(snr, min_snr_gamma) / snr)
    return jnp.mean(losses)


# ----------------------------- main --------------------------------------------
if __name__ == "__main__":
    B, C, H, W = 2, 4, 16, 16     # batch, channels, image_size x image_size
    # module defaults: noise_schedule='linear', min_snr_loss_weight=False

    key = jax.random.PRNGKey(0)
    k_img, k_t, k_noise, k_w, k_b = jax.random.split(key, 5)

    img = jax.random.uniform(k_img, (B, C, H, W), dtype=jnp.float32)     # data in [0, 1]
    times = jax.random.uniform(k_t, (B,), dtype=jnp.float32)             # random_times: U(0, 1)
    noise = jax.random.normal(k_noise, (B, C, H, W), dtype=jnp.float32)

    # deterministic synthetic denoiser parameters (pointwise conv over channels)
    w = 0.1 * jax.random.normal(k_w, (C, C), dtype=jnp.float32)
    bias = 0.01 * jax.random.normal(k_b, (C,), dtype=jnp.float32)

    # parameter-only prep done once, outside the per-step path
    wbd, bias_rows = jax.block_until_ready(prepare_denoiser_params(w, bias, B))

    loss = continuous_time_gaussian_diffusion_loss(img, times, noise, wbd, bias_rows,
                                                   min_snr_loss_weight=False,
                                                   min_snr_gamma=5.0)
    loss = jax.block_until_ready(loss)

    ref = jax.block_until_ready(reference_loss(img, times, noise, w, bias,
                                               min_snr_loss_weight=False,
                                               min_snr_gamma=5.0))

    np.testing.assert_allclose(np.asarray(loss), np.asarray(ref), rtol=1e-4, atol=1e-6)
    print("KERNEL_OK")
</pallas_src>

<mosaic_0001>
module attributes {stable_mosaic.version = 11 : i64} {
  func.func @kernel(%arg0: i32, %arg1: memref<8x2xf32, #tpu.memory_space<vmem>>, %arg2: memref<8x256xf32, #tpu.memory_space<vmem>>, %arg3: memref<8x256xf32, #tpu.memory_space<vmem>>, %arg4: memref<8x8xf32, #tpu.memory_space<vmem>>, %arg5: memref<1x1xf32, #tpu.memory_space<smem>>) attributes {dimension_semantics = [#tpu.dimension_semantics<arbitrary>], iteration_bounds = array<i64: 1>, scalar_prefetch = 0 : i64, scratch_operands = 0 : i64, tpu.core_type = #tpu.core_type<tc>, window_params = [{pipeline_mode = #tpu.pipeline_mode<synchronous>, transform_indices = @transform_0, window_bounds = array<i64: 8, 2>}, {transform_indices = @transform_1, window_bounds = array<i64: 8, 256>}, {transform_indices = @transform_2, window_bounds = array<i64: 8, 256>}, {pipeline_mode = #tpu.pipeline_mode<synchronous>, transform_indices = @transform_3, window_bounds = array<i64: 8, 8>}, {transform_indices = @transform_4, window_bounds = array<i64: 1, 1>}]} {
    %c0 = arith.constant 0 : index
    %c0_0 = arith.constant 0 : index
    %0 = vector.load %arg1[%c0, %c0_0] : memref<8x2xf32, #tpu.memory_space<vmem>>, vector<8x1xf32>
    %c0_1 = arith.constant 0 : index
    %c1 = arith.constant 1 : index
    %1 = vector.load %arg1[%c0_1, %c1] : memref<8x2xf32, #tpu.memory_space<vmem>>, vector<8x1xf32>
    %cst = arith.constant 1.000000e+01 : f32
    %2 = vector.broadcast %cst : f32 to vector<8x1xf32>
    %3 = arith.mulf %2, %0 : vector<8x1xf32>
    %4 = arith.mulf %3, %0 : vector<8x1xf32>
    %cst_2 = arith.constant 9.99999974E-5 : f32
    %5 = vector.broadcast %cst_2 : f32 to vector<8x1xf32>
    %6 = arith.addf %5, %4 : vector<8x1xf32>
    %cst_3 = arith.constant 0.0416666679 : f32
    %7 = vector.broadcast %cst_3 : f32 to vector<8x1xf32>
    %8 = arith.mulf %6, %7 : vector<8x1xf32>
    %cst_4 = arith.constant 0.166666672 : f32
    %9 = vector.broadcast %cst_4 : f32 to vector<8x1xf32>
    %10 = arith.addf %9, %8 : vector<8x1xf32>
    %11 = arith.mulf %6, %10 : vector<8x1xf32>
    %cst_5 = arith.constant 5.000000e-01 : f32
    %12 = vector.broadcast %cst_5 : f32 to vector<8x1xf32>
    %13 = arith.addf %12, %11 : vector<8x1xf32>
    %14 = arith.mulf %6, %13 : vector<8x1xf32>
    %cst_6 = arith.constant 1.000000e+00 : f32
    %15 = vector.broadcast %cst_6 : f32 to vector<8x1xf32>
    %16 = arith.addf %15, %14 : vector<8x1xf32>
    %17 = arith.mulf %6, %16 : vector<8x1xf32>
    %cst_7 = arith.constant 1.000000e-01 : f32
    %18 = vector.broadcast %cst_7 : f32 to vector<8x1xf32>
    %19 = arith.cmpf olt, %6, %18 : vector<8x1xf32>
    %20 = math.exp %6 : vector<8x1xf32>
    %cst_8 = arith.constant 1.000000e+00 : f32
    %21 = vector.broadcast %cst_8 : f32 to vector<8x1xf32>
    %22 = arith.subf %20, %21 : vector<8x1xf32>
    %23 = arith.select %19, %17, %22 : vector<8x1xi1>, vector<8x1xf32>
    %cst_9 = arith.constant 1.000000e+00 : f32
    %24 = vector.broadcast %cst_9 : f32 to vector<8x1xf32>
    %25 = arith.addf %24, %23 : vector<8x1xf32>
    %26 = math.rsqrt %25 : vector<8x1xf32>
    %27 = math.sqrt %23 : vector<8x1xf32>
    %28 = arith.mulf %27, %26 : vector<8x1xf32>
    %c0_10 = arith.constant 0 : index
    %c0_11 = arith.constant 0 : index
    %29 = vector.load %arg2[%c0_10, %c0_11] : memref<8x256xf32, #tpu.memory_space<vmem>>, vector<8x256xf32>
    %cst_12 = arith.constant 2.000000e+00 : f32
    %30 = vector.broadcast %cst_12 : f32 to vector<8x256xf32>
    %31 = arith.mulf %29, %30 : vector<8x256xf32>
    %cst_13 = arith.constant 1.000000e+00 : f32
    %32 = vector.broadcast %cst_13 : f32 to vector<8x256xf32>
    %33 = arith.subf %31, %32 : vector<8x256xf32>
    %c0_14 = arith.constant 0 : index
    %c0_15 = arith.constant 0 : index
    %34 = vector.load %arg3[%c0_14, %c0_15] : memref<8x256xf32, #tpu.memory_space<vmem>>, vector<8x256xf32>
    %35 = vector.broadcast %26 : vector<8x1xf32> to vector<8x256xf32>
    %36 = arith.mulf %35, %33 : vector<8x256xf32>
    %37 = vector.broadcast %28 : vector<8x1xf32> to vector<8x256xf32>
    %38 = arith.mulf %37, %34 : vector<8x256xf32>
    %39 = arith.addf %36, %38 : vector<8x256xf32>
    %c0_16 = arith.constant 0 : index
    %c0_17 = arith.constant 0 : index
    %40 = vector.load %arg4[%c0_16, %c0_17] : memref<8x8xf32, #tpu.memory_space<vmem>>, vector<8x8xf32>
    %cst_18 = arith.constant dense<0.000000e+00> : vector<8x256xf32>
    %41 = tpu.matmul %40, %39, %cst_18 {dimension_numbers = #tpu.dot_dimension_numbers<[1], [0], [0], [1], [0, 0, 1, 1], [], []>} : vector<8x8xf32>, vector<8x256xf32>, vector<8x256xf32> -> vector<8x256xf32>
    %42 = vector.broadcast %1 : vector<8x1xf32> to vector<8x256xf32>
    %43 = arith.addf %41, %42 : vector<8x256xf32>
    %44 = arith.subf %43, %34 : vector<8x256xf32>
    %45 = arith.mulf %44, %44 : vector<8x256xf32>
    %46 = vector.shape_cast %45 : vector<8x256xf32> to vector<1x8x256xf32>
    %cst_19 = arith.constant dense<0.000000e+00> : vector<1xf32>
    %47 = vector.multi_reduction <add>, %46, %cst_19 [1, 2] : vector<1x8x256xf32> to vector<1xf32>
    %48 = vector.shape_cast %47 : vector<1xf32> to vector<1x1x1xf32>
    %49 = vector.extract %48[0, 0, 0] : f32 from vector<1x1x1xf32>
    %cst_20 = arith.constant 4.8828125E-4 : f32
    %50 = arith.mulf %49, %cst_20 : f32
    %c0_i32 = arith.constant 0 : i32
    %51 = arith.cmpi eq, %arg0, %c0_i32 : i32
    %52 = arith.extui %51 : i1 to i32
    %c0_i32_21 = arith.constant 0 : i32
    %53 = arith.cmpi ne, %52, %c0_i32_21 : i32
    scf.if %53 {
      %cst_26 = arith.constant 0.000000e+00 : f32
      %c0_27 = arith.constant 0 : index
      %c0_28 = arith.constant 0 : index
      %57 = memref.load %arg5[%c0_27, %c0_28] : memref<1x1xf32, #tpu.memory_space<smem>>
      memref.store %cst_26, %arg5[%c0_27, %c0_28] : memref<1x1xf32, #tpu.memory_space<smem>>
    } else {
    }
    %c0_22 = arith.constant 0 : index
    %c0_23 = arith.constant 0 : index
    %54 = memref.load %arg5[%c0_22, %c0_23] : memref<1x1xf32, #tpu.memory_space<smem>>
    %55 = arith.addf %54, %50 : f32
    %c0_24 = arith.constant 0 : index
    %c0_25 = arith.constant 0 : index
    %56 = memref.load %arg5[%c0_24, %c0_25] : memref<1x1xf32, #tpu.memory_space<smem>>
    memref.store %55, %arg5[%c0_24, %c0_25] : memref<1x1xf32, #tpu.memory_space<smem>>
    return
  }
  func.func @transform_0(%arg0: i32) -> (i32, i32) {
    %c0_i32 = arith.constant 0 : i32
    %c0_i32_0 = arith.constant 0 : i32
    %c0_i32_1 = arith.constant 0 : i32
    return %c0_i32, %c0_i32_0 : i32, i32
  }
  func.func @transform_1(%arg0: i32) -> (i32, i32) {
    %c0_i32 = arith.constant 0 : i32
    %c0_i32_0 = arith.constant 0 : i32
    return %c0_i32, %arg0 : i32, i32
  }
  func.func @transform_2(%arg0: i32) -> (i32, i32) {
    %c0_i32 = arith.constant 0 : i32
    %c0_i32_0 = arith.constant 0 : i32
    return %c0_i32, %arg0 : i32, i32
  }
  func.func @transform_3(%arg0: i32) -> (i32, i32) {
    %c0_i32 = arith.constant 0 : i32
    %c0_i32_0 = arith.constant 0 : i32
    %c0_i32_1 = arith.constant 0 : i32
    return %c0_i32, %c0_i32_0 : i32, i32
  }
  func.func @transform_4(%arg0: i32) -> (i32, i32) {
    %c0_i32 = arith.constant 0 : i32
    %c0_i32_0 = arith.constant 0 : i32
    %c0_i32_1 = arith.constant 0 : i32
    return %c0_i32, %c0_i32_0 : i32, i32
  }
}

</mosaic_0001>

<llo_original>
// kernel: continuous_time_gaussian_diffusion_loss.1
$region0: #{continuous_time_gaussian_diffusion_loss.1}
  #allocation0 [shape = 'u32[]', space=smem, size = 0x4, offset = 0x4, fixed_abs, tag = 'smem constant byte address 0x4 - core index']
  #allocation1 [shape = 'u32[144,128]{1,0:T(1,128)}', space=vmem, size = 0x12000, scoped, tag = 'internal scratch']
  %s0 = inlined_call_operand.vmem [shape: f32[8,2], index: 0, kind: input, shape index: {}]
  %s1 = inlined_call_operand.vmem [shape: f32[8,256], index: 1, kind: input, shape index: {}]
  %s2 = inlined_call_operand.vmem [shape: f32[8,256], index: 2, kind: input, shape index: {}]
  %s3 = inlined_call_operand.vmem [shape: f32[8,8], index: 3, kind: input, shape index: {}]
  %s4 = inlined_call_operand.hbm [shape: f32[1,1], index: 4, kind: output, shape index: {}]
  %s5 = sld [smem:[#allocation0]]
  $region30: #{continuous_time_gaussian_diffusion_loss.1} parent=0
    _
  %s7 = ssub.s32 1, %s5
  %s8 = scalar_select 0, %s7, %s5
  $region1: #{continuous_time_gaussian_diffusion_loss.1} parent=0
    #allocation2 [shape = 'u8[512]{0}', space=smem, size = 0x200, scoped, tag = 'output window, operand 0, single buffered']
    #allocation3 [shape = 's32[1]{0}', space=sflag, size = 0x4, scoped, tag = 'scoped memory for continuous_time_gaussian_diffusion_loss.1']
    %9 = vsyncpa [#allocation3], 0
    // Predicated region
    $region2: #{continuous_time_gaussian_diffusion_loss.1} parent=1 // pred_check
      _
    $region3: #{continuous_time_gaussian_diffusion_loss.1} parent=1 // pred_check_branch
      %11 = sbr.rel (0) target = $region5
    $region4: #{continuous_time_gaussian_diffusion_loss.1} parent=1 // pred_region
      _
    $region5: #{continuous_time_gaussian_diffusion_loss.1} parent=1 // pred_fallthru
      _
    // Predicated region
    $region6: #{continuous_time_gaussian_diffusion_loss.1} parent=1 // pred_check
      _
    $region7: #{continuous_time_gaussian_diffusion_loss.1} parent=1 // pred_check_branch
      %13 = sbr.rel (0) target = $region9
    $region8: #{continuous_time_gaussian_diffusion_loss.1} parent=1 // pred_region
      _
    $region9: #{continuous_time_gaussian_diffusion_loss.1} parent=1 // pred_fallthru
      _
    // Predicated region
    $region10: #{continuous_time_gaussian_diffusion_loss.1} parent=1 // pred_check
      _
    $region11: #{continuous_time_gaussian_diffusion_loss.1} parent=1 // pred_check_branch
      %15 = sbr.rel (0) target = $region13
    $region12: #{continuous_time_gaussian_diffusion_loss.1} parent=1 // pred_region
      _
    $region13: #{continuous_time_gaussian_diffusion_loss.1} parent=1 // pred_fallthru
      _
    // Predicated region
    $region14: #{continuous_time_gaussian_diffusion_loss.1} parent=1 // pred_check
      _
    $region15: #{continuous_time_gaussian_diffusion_loss.1} parent=1 // pred_check_branch
      %17 = sbr.rel (0) target = $region17
    $region16: #{continuous_time_gaussian_diffusion_loss.1} parent=1 // pred_region
      _
    $region17: #{continuous_time_gaussian_diffusion_loss.1} parent=1 // pred_fallthru
      _
    %v18 = vld [vmem:[%s0] sm:$0xff]
    %v19 = vmul.f32 %v18, 10.0
    %v20 = vmul.f32 %v19, %v18
    %v21 = vadd.f32 %v20, 0.0001
    %v22 = vmul.f32 %v21, 0.041666668
    %v23 = vadd.f32 %v22, 0.16666667
    %v24 = vmul.f32 %v21, %v23
    %v25 = vadd.f32 %v24, 0.5
    %v26 = vmul.f32 %v21, %v25
    %v27 = vadd.f32 %v26, 1.0
    %v28 = vmul.f32 %v21, %v27
    %vm29 = vcmp.lt.f32.partialorder %v21, 0.1
    %v30 = vmul.f32 %v21, 1.442695
    %v31 = vpow.pop %v30
    %v32 = vsub.f32 %v31, 1.0
    %v33 = vsel %vm29, %v28, %v32
    %v34 = vadd.f32 %v33, 1.0
    %v35 = vrsqrt.pop %v34
    %v36 = vrsqrt.pop %v33
    %v37 = vmul.f32 %v33, %v36
    %vm38 = vcmp.eq.f32.partialorder %v33, inf
    %v39 = vsel %vm38, %v33, %v37
    %vm40 = vcmp.eq.f32.partialorder %v33, 0.0
    %v41 = vand.u32 %v33, 2147483648
    %v42 = vsel %vm40, %v41, %v39
    %v43 = vmul.f32 %v42, %v35
    %v44 = vld [vmem:[%s1] sm:$0xff]
    %v45 = vld [vmem:[%s1 + $0x8] sm:$0xff]
    %v46 = vmul.f32 %v44, 2.0
    %v47 = vmul.f32 %v45, 2.0
    %v48 = vsub.f32 %v46, 1.0
    %v49 = vsub.f32 %v47, 1.0
    %v50 = vld [vmem:[%s2] sm:$0xff]
    %v51 = vld [vmem:[%s2 + $0x8] sm:$0xff]
    %53 = vset.pattern.permute.xlu0 0
    %54 = vperm.xlu0 %53, %v35
    %v55 = vpop.permute.xlu0 %54
    %v57 = vmul.f32 %v55, %v48
    %v58 = vmul.f32 %v55, %v49
    %60 = vset.pattern.permute.xlu0 0
    %61 = vperm.xlu0 %60, %v43
    %v62 = vpop.permute.xlu0 %61
    %v64 = vmul.f32 %v62, %v50
    %v65 = vmul.f32 %v62, %v51
    %v66 = vadd.f32 %v57, %v64
    %v67 = vadd.f32 %v58, %v65
    %v68 = vld [vmem:[%s3] sm:$0xff]
    %70 = vset.pattern.permute.xlu0 1
    %71 = vperm.xlu0 %70, %v18
    %v72 = vpop.permute.xlu0 %71
    %vm74 = vcmask 64512
    %v76 = vsel %vm74, %v68, 0
    %78 = vmatprep.subr.mxu0 %v67
    %79 = vmatpush1.msra.mxu0 %v66
    %80 = vmatprep.subr.mxu0 0.0
    %81 = vmatpush1.msra.mxu0 0.0
    %82 = vmatprep.subr.mxu0 0.0
    %83 = vmatpush1.msra.mxu0 0.0
    %84 = vmatprep.subr.mxu0 0.0
    %85 = vmatpush1.msra.mxu0 0.0
    %86 = vmatprep.subr.mxu0 0.0
    %87 = vmatpush1.msra.mxu0 0.0
    %88 = vmatprep.subr.mxu0 0.0
    %89 = vmatpush1.msra.mxu0 0.0
    %90 = vmatprep.subr.mxu0 0.0
    %91 = vmatpush1.msra.mxu0 0.0
    %92 = vmatprep.subr.mxu0 0.0
    %93 = vmatpush1.msra.mxu0 0.0
    %94 = vmatprep.subr.mxu0 0.0
    %95 = vmatpush1.msra.mxu0 0.0
    %96 = vmatprep.subr.mxu0 0.0
    %97 = vmatpush1.msra.mxu0 0.0
    %98 = vmatprep.subr.mxu0 0.0
    %99 = vmatpush1.msra.mxu0 0.0
    %100 = vmatprep.subr.mxu0 0.0
    %101 = vmatpush1.msra.mxu0 0.0
    %102 = vmatprep.subr.mxu0 0.0
    %103 = vmatpush1.msra.mxu0 0.0
    %104 = vmatprep.subr.mxu0 0.0
    %105 = vmatpush1.msra.mxu0 0.0
    %106 = vmatprep.subr.mxu0 0.0
    %107 = vmatpush1.msra.mxu0 0.0
    %108 = vmatprep.subr.mxu0 0.0
    %109 = vmatpush1.msra.mxu0 0.0
    %110 = vmatprep.subr.mxu0 0.0
    %111 = vmatpush1.msra.mxu0 0.0
    %112 = vmatprep.subr.mxu0 0.0
    %113 = vmatpush1.msra.mxu0 0.0
    %114 = vmatprep.subr.mxu0 0.0
    %115 = vmatpush1.msra.mxu0 0.0
    %116 = vmatprep.subr.mxu0 0.0
    %117 = vmatpush1.msra.mxu0 0.0
    %118 = vmatprep.subr.mxu0 0.0
    %119 = vmatpush1.msra.mxu0 0.0
    %120 = vmatprep.subr.mxu0 0.0
    %121 = vmatpush1.msra.mxu0 0.0
    %122 = vmatprep.subr.mxu0 0.0
    %123 = vmatpush1.msra.mxu0 0.0
    %124 = vmatprep.subr.mxu0 0.0
    %125 = vmatpush1.msra.mxu0 0.0
    %126 = vmatprep.subr.mxu0 0.0
    %127 = vmatpush1.msra.mxu0 0.0
    %128 = vmatprep.subr.mxu0 0.0
    %129 = vmatpush1.msra.mxu0 0.0
    %130 = vmatprep.subr.mxu0 0.0
    %131 = vmatpush1.msra.mxu0 0.0
    %132 = vmatprep.subr.mxu0 0.0
    %133 = vmatpush1.msra.mxu0 0.0
    %134 = vmatprep.subr.mxu0 0.0
    %135 = vmatpush1.msra.mxu0 0.0
    %136 = vmatprep.subr.mxu0 0.0
    %137 = vmatpush1.msra.mxu0 0.0
    %138 = vmatprep.subr.mxu0 0.0
    %139 = vmatpush1.msra.mxu0 0.0
    %140 = vmatprep.subr.mxu0 0.0
    %141 = vmatpush1.msra.mxu0 0.0
    %142 = vmatprep.mubr.f32.mxu0 0.0
    %143 = vmatmul.mubr.f32.gmra.mrb[0].mxu0 %v76
    %v144 = vpop.f32.mrb[0].mxu0
    %v145 = vadd.f32 %v72, %v144
    %v146 = vpop.f32.mrb[0].mxu0
    %v147 = vadd.f32 %v72, %v146
    %148 = vdwg.mxu0
    %v149 = vsub.f32 %v145, %v50
    %v150 = vsub.f32 %v147, %v51
    %v151 = vmul.f32 %v149, %v149
    %v152 = vmul.f32 %v150, %v150
    %v153 = vadd.f32 %v151, %v152
    %154 = vadd.xlane.f32.xlu0 %v153
    %v155 = vpop.xlane.xlu0 %154
    %v156 = vrot.slane %v155, 4
    %v157 = vadd.f32 %v155, %v156
    %v158 = vrot.slane %v157, 2
    %v159 = vadd.f32 %v157, %v158
    %v160 = vrot.slane %v159, 1
    %v161 = vadd.f32 %v159, %v160
    %s162 = vtos %v161
    %s163 = smul.f32 %s162, 0.00048828125
    %p164 = scmp.eq.s32.totalorder 0, 0
    // Predicated region
    $region18: #{continuous_time_gaussian_diffusion_loss.1} parent=1 // pred_check
      %p165 = pneg %p164
    $region19: #{continuous_time_gaussian_diffusion_loss.1} parent=1 // pred_check_branch
      %167 = sbr.rel (%p165) target = $region21
    $region20: #{continuous_time_gaussian_diffusion_loss.1} parent=1 // pred_region
      %s168 = scalar_lea.smem [#allocation2], 0
      %169 = sst [smem:[%s168]] 0.0
    $region21: #{continuous_time_gaussian_diffusion_loss.1} parent=1 // pred_fallthru
      _
    %s170 = sld [smem:[#allocation2]]
    %s171 = sadd.f32 %s170, %s163
    %s172 = scalar_lea.smem [#allocation2], 0
    %173 = sst [smem:[%s172]] %s171
    // Predicated region
    $region22: #{continuous_time_gaussian_diffusion_loss.1} parent=1 // pred_check
      _
    $region23: #{continuous_time_gaussian_diffusion_loss.1} parent=1 // pred_check_branch
      %175 = sbr.rel (0) target = $region25
    $region24: #{continuous_time_gaussian_diffusion_loss.1} parent=1 // pred_region
      %s177 = ssub.s32 16, 16
      %178 = vsyncadd [#allocation3], %s177
      %181 = dma.smem_to_hbm [#allocation2], 16, %s4, [#allocation3]
    $region25: #{continuous_time_gaussian_diffusion_loss.1} parent=1 // pred_fallthru
      _
    // Predicated region
    $region26: #{continuous_time_gaussian_diffusion_loss.1} parent=1 // pred_check
      _
    $region27: #{continuous_time_gaussian_diffusion_loss.1} parent=1 // pred_check_branch
      %183 = sbr.rel (0) target = $region29
    $region28: #{continuous_time_gaussian_diffusion_loss.1} parent=1 // pred_region
      %184 = dma.done [#allocation3], 16
    $region29: #{continuous_time_gaussian_diffusion_loss.1} parent=1 // pred_fallthru
      _
    %185 = sfence
    %186 = vsyncpa [#allocation3], 1

</llo_original>
